<compile_context>
chip_gen: v7x
topology: tpu7x:2x2x1
jax: 0.10.0
libtpu: 0.0.40
codegen_flags: <defaults>
</compile_context>

<pallas_src>
import functools

import jax
import jax.numpy as jnp
from jax.experimental import pallas as pl
from jax.experimental.pallas import tpu as pltpu

H1 = 128
H2 = 64
LANES = 128
SUBLANES = 8


def _round_up(x, m):
    return ((x + m - 1) // m) * m


def _tb_cap():
    """Generation-aware batch-tile cap (keeps the live set well inside VMEM)."""
    try:
        info = pltpu.get_tpu_info()
        vmem = getattr(info, "vmem_capacity_bytes", 0)
        if vmem and vmem >= 100 * 1024 * 1024:
            return 8192          # v5e / v6e: 128 MiB physical VMEM
    except Exception:
        pass
    return 4096                  # v7x: 64 MiB VMEM (32 MiB scoped default)


def qnet_kernel(obs_ref, w1_ref, b1_ref, w2_ref, b2_ref, w3_ref, b3_ref,
                out_ref, *, num_agents, n_obs, n_act):
    """One batch tile; static (unrolled) loop over agents.

    obs_ref : (tb, A*n_obs) f32
    w*_ref  : full stacked weights (bf16) / biases (f32), resident in VMEM
    out_ref : (A, tb, n_act) f32
    """
    for a in range(num_agents):
        # Static lane slice of this agent's observation chunk; cast to bf16 in
        # registers (cheaper than an extra HBM pass casting obs in the wrapper,
        # since there is no transpose to fuse the cast into).
        x = obs_ref[:, a * n_obs:(a + 1) * n_obs].astype(jnp.bfloat16)

        h1 = jnp.dot(x, w1_ref[a], preferred_element_type=jnp.float32)
        h1 = jnp.maximum(h1 + b1_ref[a], 0.0)                    # (tb, 128) f32

        h2 = jnp.dot(h1.astype(jnp.bfloat16), w2_ref[a],
                     preferred_element_type=jnp.float32)
        h2 = jnp.maximum(h2 + b2_ref[a], 0.0)                    # (tb, 64) f32

        q = jnp.dot(h2.astype(jnp.bfloat16), w3_ref[a],
                    preferred_element_type=jnp.float32)
        q = q + b3_ref[a]                                        # (tb, 128) f32

        # Drop the zero-padded lanes in registers; store only n_act lanes so
        # HBM writeback is ~n_act/128 of the padded variant.
        out_ref[a] = q[:, :n_act].astype(out_ref.dtype)


def pack_params(params):
    """f32 PyTorch-style params -> kernel-ready params.

    Weights -> bf16 (MXU-native, half the DMA); biases stay f32; w3/b3 are
    zero-padded along the output dim to 128 lanes for a clean MXU matmul (the
    pad lanes never reach HBM -- the kernel slices them off before storing).
    """
    w1, b1, w2, b2, w3, b3 = params
    num_agents = w1.shape[0]
    n_act = w3.shape[-1]
    n_pad = _round_up(n_act, LANES)

    w3p = jnp.zeros((num_agents, H2, n_pad), jnp.float32).at[:, :, :n_act].set(w3)
    b3p = jnp.zeros((num_agents, 1, n_pad), jnp.float32).at[:, :, :n_act].set(b3)

    return (
        w1.astype(jnp.bfloat16),
        b1.astype(jnp.float32),
        w2.astype(jnp.bfloat16),
        b2.astype(jnp.float32),
        w3p.astype(jnp.bfloat16),
        b3p.astype(jnp.float32),
    )


@functools.partial(jax.jit, static_argnames=("n_act", "tb"))
def _qnet_forward_impl(obs, packed_params, *, n_act, tb):
    """obs: [B, A, n_obs] f32 -> q_values: [B, A, n_act] f32."""
    w1, b1, w2, b2, w3p, b3p = packed_params
    batch, num_agents, n_obs = obs.shape

    # Contiguous reshape (no transpose): [B, A, n_obs] -> [B, A*n_obs].
    obs2 = obs.reshape(batch, num_agents * n_obs)
    b_pad = _round_up(batch, tb)
    if b_pad != batch:
        obs2 = jnp.pad(obs2, ((0, b_pad - batch), (0, 0)))
    n_btiles = b_pad // tb

    kernel = functools.partial(
        qnet_kernel, num_agents=num_agents, n_obs=n_obs, n_act=n_act)

    out = pl.pallas_call(
        kernel,
        out_shape=jax.ShapeDtypeStruct((num_agents, b_pad, n_act), jnp.float32),
        grid_spec=pltpu.PrefetchScalarGridSpec(
            num_scalar_prefetch=0,
            # Single batch-tile axis; weight block indices are constant across
            # it, so the full weight stacks are DMA'd exactly once.
            grid=(n_btiles,),
            in_specs=[
                pl.BlockSpec((tb, num_agents * n_obs), lambda b: (b, 0)),
                pl.BlockSpec(w1.shape, lambda b: (0, 0, 0)),
                pl.BlockSpec(b1.shape, lambda b: (0, 0, 0)),
                pl.BlockSpec(w2.shape, lambda b: (0, 0, 0)),
                pl.BlockSpec(b2.shape, lambda b: (0, 0, 0)),
                pl.BlockSpec(w3p.shape, lambda b: (0, 0, 0)),
                pl.BlockSpec(b3p.shape, lambda b: (0, 0, 0)),
            ],
            out_specs=pl.BlockSpec((num_agents, tb, n_act), lambda b: (0, b, 0)),
        ),
        compiler_params=pltpu.CompilerParams(
            # Batch-tile axis is the (only, big) parallel axis -> good 2-TC
            # load balance on v7x even with 1-2 agents; no-op on v5e/v6e.
            dimension_semantics=("parallel",),
            vmem_limit_bytes=(64 if tb > 4096 else 32) * 1024 * 1024,
        ),
    )(obs2, w1, b1, w2, b2, w3p, b3p)

    # Tiny output: slice off batch padding and go back to PyTorch layout.
    return jnp.transpose(out[:, :batch, :], (1, 0, 2))           # [B, A, n_act]


def qnet_forward(obs, packed_params, n_act, *, tb=None):
    """PyTorch-layout entry point: obs [B, A, n_obs] f32 -> [B, A, n_act] f32."""
    batch = obs.shape[0]
    if tb is None:
        tb = min(_round_up(batch, SUBLANES), _tb_cap())
    tb = max(SUBLANES, _round_up(tb, SUBLANES))
    return _qnet_forward_impl(obs, packed_params, n_act=n_act, tb=tb)


def init_params(key, num_agents, n_obs, n_act):
    """Deterministic synthetic f32 init; weights stored as [in, out] (== PyTorch W.T)."""
    ks = jax.random.split(key, 6)
    w1 = jax.random.normal(ks[0], (num_agents, n_obs, H1), jnp.float32) * 0.1
    b1 = jax.random.normal(ks[1], (num_agents, 1, H1), jnp.float32) * 0.01
    w2 = jax.random.normal(ks[2], (num_agents, H1, H2), jnp.float32) * 0.1
    b2 = jax.random.normal(ks[3], (num_agents, 1, H2), jnp.float32) * 0.01
    w3 = jax.random.normal(ks[4], (num_agents, H2, n_act), jnp.float32) * 0.1
    b3 = jax.random.normal(ks[5], (num_agents, 1, n_act), jnp.float32) * 0.01
    return (w1, b1, w2, b2, w3, b3)


def qnet_reference(obs, params):
    """Plain-JAX reference matching the PyTorch forward, mirroring the kernel's
    precision choices (bf16 matmul operands, f32 accumulation, f32 bias/ReLU)."""
    w1, b1, w2, b2, w3, b3 = params
    bf = jnp.bfloat16
    outs = []
    for a in range(obs.shape[1]):
        x = obs[:, a, :]
        h1 = jnp.maximum(
            jnp.dot(x.astype(bf), w1[a].astype(bf),
                    preferred_element_type=jnp.float32) + b1[a], 0.0)
        h2 = jnp.maximum(
            jnp.dot(h1.astype(bf), w2[a].astype(bf),
                    preferred_element_type=jnp.float32) + b2[a], 0.0)
        q = jnp.dot(h2.astype(bf), w3[a].astype(bf),
                    preferred_element_type=jnp.float32) + b3[a]
        outs.append(q[:, None, :])
    return jnp.concatenate(outs, axis=1)


if __name__ == "__main__":
    key = jax.random.PRNGKey(0)
    batch = 40          # not a multiple of the tile -> exercises B padding
    num_agents = 2
    n_obs = 16
    n_act = 5

    k_obs, k_par = jax.random.split(key)
    obs = jax.random.normal(k_obs, (batch, num_agents, n_obs), jnp.float32)
    params = init_params(k_par, num_agents, n_obs, n_act)
    packed = pack_params(params)

    q_ref = qnet_reference(obs, params)

    # Small tb to exercise multiple batch tiles + padded final tile.
    q = qnet_forward(obs, packed, n_act, tb=16)
    jax.block_until_ready(q)
    assert q.shape == (batch, num_agents, n_act)
    assert jnp.allclose(q, q_ref, atol=1e-3, rtol=1e-3), (
        float(jnp.max(jnp.abs(q - q_ref))))

    # Auto-picked (large, generation-aware) tile size.
    q2 = qnet_forward(obs, packed, n_act)
    jax.block_until_ready(q2)
    assert jnp.allclose(q2, q_ref, atol=1e-3, rtol=1e-3)

    # TODO(synk): sample_action's epsilon-greedy RNG branch is host-side logic,
    # not part of the forward pass, and is intentionally not implemented here.
    print("KERNEL_OK")
</pallas_src>

<mosaic_0001>
module attributes {stable_mosaic.version = 11 : i64} {
  func.func @qnet_kernel(%arg0: i32, %arg1: memref<16x32xf32, #tpu.memory_space<vmem>>, %arg2: memref<2x16x128xbf16, #tpu.memory_space<vmem>>, %arg3: memref<2x1x128xf32, #tpu.memory_space<vmem>>, %arg4: memref<2x128x64xbf16, #tpu.memory_space<vmem>>, %arg5: memref<2x1x64xf32, #tpu.memory_space<vmem>>, %arg6: memref<2x64x128xbf16, #tpu.memory_space<vmem>>, %arg7: memref<2x1x128xf32, #tpu.memory_space<vmem>>, %arg8: memref<2x16x5xf32, #tpu.memory_space<vmem>>) attributes {dimension_semantics = [#tpu.dimension_semantics<parallel>], iteration_bounds = array<i64: 3>, scalar_prefetch = 0 : i64, scratch_operands = 0 : i64, tpu.core_type = #tpu.core_type<tc>, window_params = [{transform_indices = @transform_0, window_bounds = array<i64: 16, 32>}, {pipeline_mode = #tpu.pipeline_mode<synchronous>, transform_indices = @transform_1, window_bounds = array<i64: 2, 16, 128>}, {pipeline_mode = #tpu.pipeline_mode<synchronous>, transform_indices = @transform_2, window_bounds = array<i64: 2, 1, 128>}, {pipeline_mode = #tpu.pipeline_mode<synchronous>, transform_indices = @transform_3, window_bounds = array<i64: 2, 128, 64>}, {pipeline_mode = #tpu.pipeline_mode<synchronous>, transform_indices = @transform_4, window_bounds = array<i64: 2, 1, 64>}, {pipeline_mode = #tpu.pipeline_mode<synchronous>, transform_indices = @transform_5, window_bounds = array<i64: 2, 64, 128>}, {pipeline_mode = #tpu.pipeline_mode<synchronous>, transform_indices = @transform_6, window_bounds = array<i64: 2, 1, 128>}, {transform_indices = @transform_7, window_bounds = array<i64: 2, 16, 5>}]} {
    %c0 = arith.constant 0 : index
    %c0_0 = arith.constant 0 : index
    %0 = vector.load %arg1[%c0, %c0_0] : memref<16x32xf32, #tpu.memory_space<vmem>>, vector<16x16xf32>
    %1 = arith.truncf %0 : vector<16x16xf32> to vector<16x16xbf16>
    %c0_1 = arith.constant 0 : index
    %c0_2 = arith.constant 0 : index
    %c0_3 = arith.constant 0 : index
    %2 = vector.load %arg2[%c0_1, %c0_2, %c0_3] : memref<2x16x128xbf16, #tpu.memory_space<vmem>>, vector<1x16x128xbf16>
    %3 = vector.shape_cast %2 : vector<1x16x128xbf16> to vector<16x128xbf16>
    %cst = arith.constant dense<0.000000e+00> : vector<16x128xf32>
    %4 = tpu.matmul %1, %3, %cst {dimension_numbers = #tpu.dot_dimension_numbers<[1], [0], [0], [1], [0, 0, 1, 1], [], []>} : vector<16x16xbf16>, vector<16x128xbf16>, vector<16x128xf32> -> vector<16x128xf32>
    %c0_4 = arith.constant 0 : index
    %c0_5 = arith.constant 0 : index
    %c0_6 = arith.constant 0 : index
    %5 = vector.load %arg3[%c0_4, %c0_5, %c0_6] : memref<2x1x128xf32, #tpu.memory_space<vmem>>, vector<1x1x128xf32>
    %6 = vector.shape_cast %5 : vector<1x1x128xf32> to vector<1x128xf32>
    %7 = vector.broadcast %6 : vector<1x128xf32> to vector<16x128xf32>
    %8 = arith.addf %4, %7 : vector<16x128xf32>
    %cst_7 = arith.constant 0.000000e+00 : f32
    %9 = vector.broadcast %cst_7 : f32 to vector<16x128xf32>
    %10 = arith.maximumf %8, %9 : vector<16x128xf32>
    %11 = arith.truncf %10 : vector<16x128xf32> to vector<16x128xbf16>
    %c0_8 = arith.constant 0 : index
    %c0_9 = arith.constant 0 : index
    %c0_10 = arith.constant 0 : index
    %12 = vector.load %arg4[%c0_8, %c0_9, %c0_10] : memref<2x128x64xbf16, #tpu.memory_space<vmem>>, vector<1x128x64xbf16>
    %13 = vector.shape_cast %12 : vector<1x128x64xbf16> to vector<128x64xbf16>
    %cst_11 = arith.constant dense<0.000000e+00> : vector<16x64xf32>
    %14 = tpu.matmul %11, %13, %cst_11 {dimension_numbers = #tpu.dot_dimension_numbers<[1], [0], [0], [1], [0, 0, 1, 1], [], []>} : vector<16x128xbf16>, vector<128x64xbf16>, vector<16x64xf32> -> vector<16x64xf32>
    %c0_12 = arith.constant 0 : index
    %c0_13 = arith.constant 0 : index
    %c0_14 = arith.constant 0 : index
    %15 = vector.load %arg5[%c0_12, %c0_13, %c0_14] : memref<2x1x64xf32, #tpu.memory_space<vmem>>, vector<1x1x64xf32>
    %16 = vector.shape_cast %15 : vector<1x1x64xf32> to vector<1x64xf32>
    %17 = vector.broadcast %16 : vector<1x64xf32> to vector<16x64xf32>
    %18 = arith.addf %14, %17 : vector<16x64xf32>
    %cst_15 = arith.constant 0.000000e+00 : f32
    %19 = vector.broadcast %cst_15 : f32 to vector<16x64xf32>
    %20 = arith.maximumf %18, %19 : vector<16x64xf32>
    %21 = arith.truncf %20 : vector<16x64xf32> to vector<16x64xbf16>
    %c0_16 = arith.constant 0 : index
    %c0_17 = arith.constant 0 : index
    %c0_18 = arith.constant 0 : index
    %22 = vector.load %arg6[%c0_16, %c0_17, %c0_18] : memref<2x64x128xbf16, #tpu.memory_space<vmem>>, vector<1x64x128xbf16>
    %23 = vector.shape_cast %22 : vector<1x64x128xbf16> to vector<64x128xbf16>
    %cst_19 = arith.constant dense<0.000000e+00> : vector<16x128xf32>
    %24 = tpu.matmul %21, %23, %cst_19 {dimension_numbers = #tpu.dot_dimension_numbers<[1], [0], [0], [1], [0, 0, 1, 1], [], []>} : vector<16x64xbf16>, vector<64x128xbf16>, vector<16x128xf32> -> vector<16x128xf32>
    %c0_20 = arith.constant 0 : index
    %c0_21 = arith.constant 0 : index
    %c0_22 = arith.constant 0 : index
    %25 = vector.load %arg7[%c0_20, %c0_21, %c0_22] : memref<2x1x128xf32, #tpu.memory_space<vmem>>, vector<1x1x128xf32>
    %26 = vector.shape_cast %25 : vector<1x1x128xf32> to vector<1x128xf32>
    %27 = vector.broadcast %26 : vector<1x128xf32> to vector<16x128xf32>
    %28 = arith.addf %24, %27 : vector<16x128xf32>
    %29 = vector.extract_strided_slice %28 {offsets = [0, 0], sizes = [16, 5], strides = [1, 1]} : vector<16x128xf32> to vector<16x5xf32>
    %c0_23 = arith.constant 0 : index
    %c0_24 = arith.constant 0 : index
    %c0_25 = arith.constant 0 : index
    %30 = vector.load %arg8[%c0_23, %c0_24, %c0_25] : memref<2x16x5xf32, #tpu.memory_space<vmem>>, vector<1x16x5xf32>
    %31 = vector.shape_cast %30 : vector<1x16x5xf32> to vector<16x5xf32>
    %32 = vector.shape_cast %29 : vector<16x5xf32> to vector<1x16x5xf32>
    tpu.vector_store %arg8[%c0_23, %c0_24, %c0_25], %32 {strides = array<i32>} : memref<2x16x5xf32, #tpu.memory_space<vmem>>, vector<1x16x5xf32>,
    %c0_26 = arith.constant 0 : index
    %c16 = arith.constant 16 : index
    %33 = vector.load %arg1[%c0_26, %c16] : memref<16x32xf32, #tpu.memory_space<vmem>>, vector<16x16xf32>
    %34 = arith.truncf %33 : vector<16x16xf32> to vector<16x16xbf16>
    %c1 = arith.constant 1 : index
    %c0_27 = arith.constant 0 : index
    %c0_28 = arith.constant 0 : index
    %35 = vector.load %arg2[%c1, %c0_27, %c0_28] : memref<2x16x128xbf16, #tpu.memory_space<vmem>>, vector<1x16x128xbf16>
    %36 = vector.shape_cast %35 : vector<1x16x128xbf16> to vector<16x128xbf16>
    %cst_29 = arith.constant dense<0.000000e+00> : vector<16x128xf32>
    %37 = tpu.matmul %34, %36, %cst_29 {dimension_numbers = #tpu.dot_dimension_numbers<[1], [0], [0], [1], [0, 0, 1, 1], [], []>} : vector<16x16xbf16>, vector<16x128xbf16>, vector<16x128xf32> -> vector<16x128xf32>
    %c1_30 = arith.constant 1 : index
    %c0_31 = arith.constant 0 : index
    %c0_32 = arith.constant 0 : index
    %38 = vector.load %arg3[%c1_30, %c0_31, %c0_32] : memref<2x1x128xf32, #tpu.memory_space<vmem>>, vector<1x1x128xf32>
    %39 = vector.shape_cast %38 : vector<1x1x128xf32> to vector<1x128xf32>
    %40 = vector.broadcast %39 : vector<1x128xf32> to vector<16x128xf32>
    %41 = arith.addf %37, %40 : vector<16x128xf32>
    %cst_33 = arith.constant 0.000000e+00 : f32
    %42 = vector.broadcast %cst_33 : f32 to vector<16x128xf32>
    %43 = arith.maximumf %41, %42 : vector<16x128xf32>
    %44 = arith.truncf %43 : vector<16x128xf32> to vector<16x128xbf16>
    %c1_34 = arith.constant 1 : index
    %c0_35 = arith.constant 0 : index
    %c0_36 = arith.constant 0 : index
    %45 = vector.load %arg4[%c1_34, %c0_35, %c0_36] : memref<2x128x64xbf16, #tpu.memory_space<vmem>>, vector<1x128x64xbf16>
    %46 = vector.shape_cast %45 : vector<1x128x64xbf16> to vector<128x64xbf16>
    %cst_37 = arith.constant dense<0.000000e+00> : vector<16x64xf32>
    %47 = tpu.matmul %44, %46, %cst_37 {dimension_numbers = #tpu.dot_dimension_numbers<[1], [0], [0], [1], [0, 0, 1, 1], [], []>} : vector<16x128xbf16>, vector<128x64xbf16>, vector<16x64xf32> -> vector<16x64xf32>
    %c1_38 = arith.constant 1 : index
    %c0_39 = arith.constant 0 : index
    %c0_40 = arith.constant 0 : index
    %48 = vector.load %arg5[%c1_38, %c0_39, %c0_40] : memref<2x1x64xf32, #tpu.memory_space<vmem>>, vector<1x1x64xf32>
    %49 = vector.shape_cast %48 : vector<1x1x64xf32> to vector<1x64xf32>
    %50 = vector.broadcast %49 : vector<1x64xf32> to vector<16x64xf32>
    %51 = arith.addf %47, %50 : vector<16x64xf32>
    %cst_41 = arith.constant 0.000000e+00 : f32
    %52 = vector.broadcast %cst_41 : f32 to vector<16x64xf32>
    %53 = arith.maximumf %51, %52 : vector<16x64xf32>
    %54 = arith.truncf %53 : vector<16x64xf32> to vector<16x64xbf16>
    %c1_42 = arith.constant 1 : index
    %c0_43 = arith.constant 0 : index
    %c0_44 = arith.constant 0 : index
    %55 = vector.load %arg6[%c1_42, %c0_43, %c0_44] : memref<2x64x128xbf16, #tpu.memory_space<vmem>>, vector<1x64x128xbf16>
    %56 = vector.shape_cast %55 : vector<1x64x128xbf16> to vector<64x128xbf16>
    %cst_45 = arith.constant dense<0.000000e+00> : vector<16x128xf32>
    %57 = tpu.matmul %54, %56, %cst_45 {dimension_numbers = #tpu.dot_dimension_numbers<[1], [0], [0], [1], [0, 0, 1, 1], [], []>} : vector<16x64xbf16>, vector<64x128xbf16>, vector<16x128xf32> -> vector<16x128xf32>
    %c1_46 = arith.constant 1 : index
    %c0_47 = arith.constant 0 : index
    %c0_48 = arith.constant 0 : index
    %58 = vector.load %arg7[%c1_46, %c0_47, %c0_48] : memref<2x1x128xf32, #tpu.memory_space<vmem>>, vector<1x1x128xf32>
    %59 = vector.shape_cast %58 : vector<1x1x128xf32> to vector<1x128xf32>
    %60 = vector.broadcast %59 : vector<1x128xf32> to vector<16x128xf32>
    %61 = arith.addf %57, %60 : vector<16x128xf32>
    %62 = vector.extract_strided_slice %61 {offsets = [0, 0], sizes = [16, 5], strides = [1, 1]} : vector<16x128xf32> to vector<16x5xf32>
    %c1_49 = arith.constant 1 : index
    %c0_50 = arith.constant 0 : index
    %c0_51 = arith.constant 0 : index
    %63 = vector.load %arg8[%c1_49, %c0_50, %c0_51] : memref<2x16x5xf32, #tpu.memory_space<vmem>>, vector<1x16x5xf32>
    %64 = vector.shape_cast %63 : vector<1x16x5xf32> to vector<16x5xf32>
    %65 = vector.shape_cast %62 : vector<16x5xf32> to vector<1x16x5xf32>
    tpu.vector_store %arg8[%c1_49, %c0_50, %c0_51], %65 {strides = array<i32>} : memref<2x16x5xf32, #tpu.memory_space<vmem>>, vector<1x16x5xf32>,
    return
  }
  func.func @transform_0(%arg0: i32) -> (i32, i32) {
    %c0_i32 = arith.constant 0 : i32
    %c0_i32_0 = arith.constant 0 : i32
    return %arg0, %c0_i32 : i32, i32
  }
  func.func @transform_1(%arg0: i32) -> (i32, i32, i32) {
    %c0_i32 = arith.constant 0 : i32
    %c0_i32_0 = arith.constant 0 : i32
    %c0_i32_1 = arith.constant 0 : i32
    %c0_i32_2 = arith.constant 0 : i32
    return %c0_i32, %c0_i32_0, %c0_i32_1 : i32, i32, i32
  }
  func.func @transform_2(%arg0: i32) -> (i32, i32, i32) {
    %c0_i32 = arith.constant 0 : i32
    %c0_i32_0 = arith.constant 0 : i32
    %c0_i32_1 = arith.constant 0 : i32
    %c0_i32_2 = arith.constant 0 : i32
    return %c0_i32, %c0_i32_0, %c0_i32_1 : i32, i32, i32
  }
  func.func @transform_3(%arg0: i32) -> (i32, i32, i32) {
    %c0_i32 = arith.constant 0 : i32
    %c0_i32_0 = arith.constant 0 : i32
    %c0_i32_1 = arith.constant 0 : i32
    %c0_i32_2 = arith.constant 0 : i32
    return %c0_i32, %c0_i32_0, %c0_i32_1 : i32, i32, i32
  }
  func.func @transform_4(%arg0: i32) -> (i32, i32, i32) {
    %c0_i32 = arith.constant 0 : i32
    %c0_i32_0 = arith.constant 0 : i32
    %c0_i32_1 = arith.constant 0 : i32
    %c0_i32_2 = arith.constant 0 : i32
    return %c0_i32, %c0_i32_0, %c0_i32_1 : i32, i32, i32
  }
  func.func @transform_5(%arg0: i32) -> (i32, i32, i32) {
    %c0_i32 = arith.constant 0 : i32
    %c0_i32_0 = arith.constant 0 : i32
    %c0_i32_1 = arith.constant 0 : i32
    %c0_i32_2 = arith.constant 0 : i32
    return %c0_i32, %c0_i32_0, %c0_i32_1 : i32, i32, i32
  }
  func.func @transform_6(%arg0: i32) -> (i32, i32, i32) {
    %c0_i32 = arith.constant 0 : i32
    %c0_i32_0 = arith.constant 0 : i32
    %c0_i32_1 = arith.constant 0 : i32
    %c0_i32_2 = arith.constant 0 : i32
    return %c0_i32, %c0_i32_0, %c0_i32_1 : i32, i32, i32
  }
  func.func @transform_7(%arg0: i32) -> (i32, i32, i32) {
    %c0_i32 = arith.constant 0 : i32
    %c0_i32_0 = arith.constant 0 : i32
    %c0_i32_1 = arith.constant 0 : i32
    return %c0_i32, %arg0, %c0_i32_0 : i32, i32, i32
  }
}

</mosaic_0001>

<llo_original>
// kernel: _qnet_forward_impl.1
$region0: #{_qnet_forward_impl.1}
  #allocation0 [shape = 'u32[]', space=smem, size = 0x4, offset = 0x4, fixed_abs, tag = 'smem constant byte address 0x4 - core index']
  #allocation1 [shape = 'u32[144,128]{1,0:T(1,128)}', space=vmem, size = 0x12000, scoped, tag = 'internal scratch']
  %s0 = inlined_call_operand.vmem [shape: f32[48,32], index: 0, kind: input, shape index: {}]
  %s1 = inlined_call_operand.vmem [shape: bf16[2,16,128], index: 1, kind: input, shape index: {}]
  %s2 = inlined_call_operand.vmem [shape: f32[2,1,128], index: 2, kind: input, shape index: {}]
  %s3 = inlined_call_operand.vmem [shape: bf16[2,128,64], index: 3, kind: input, shape index: {}]
  %s4 = inlined_call_operand.vmem [shape: f32[2,1,64], index: 4, kind: input, shape index: {}]
  %s5 = inlined_call_operand.vmem [shape: bf16[2,64,128], index: 5, kind: input, shape index: {}]
  %s6 = inlined_call_operand.vmem [shape: f32[2,1,128], index: 6, kind: input, shape index: {}]
  %s7 = inlined_call_operand.vmem [shape: f32[2,48,5], index: 7, kind: output, shape index: {}]
  %s8 = sld [smem:[#allocation0]]
  $region95: #{_qnet_forward_impl.1} parent=0
    _
  %s10 = ssub.s32 1, %s8
  %s11 = scalar_select 0, %s10, %s8
  $region1: #{_qnet_forward_impl.1} parent=0
    #allocation2 [shape = 'u8[32768]{0}', space=vmem, size = 0x8000, scoped, tag = 'output window, operand 0']
    loop: start=0, step=1, limit=5
    $region2: #{_qnet_forward_impl.1} parent=1 // loop_pre_header
      _
    $region3: #{_qnet_forward_impl.1} parent=1 // loop_header
      %s13 = sphi 0, %s17
      %p14 = scmp.ge.s32.totalorder %s13, 5
      %s23 = sphi 0, %s25
      %s26 = sphi 0, %s23
      %s27 = sphi 0, %s26
      %s43 = sphi 0, %s27
      %s47 = sphi 0, %s47
      %s49 = sphi 0, %s47
      %s50 = sphi 0, %s49
      %s64 = sphi 0, %s50
      %s68 = sphi 0, %s68
      %s70 = sphi 0, %s68
      %s71 = sphi 0, %s70
      %s85 = sphi 0, %s71
      %s89 = sphi 0, %s89
      %s91 = sphi 0, %s89
      %s92 = sphi 0, %s91
      %s106 = sphi 0, %s92
      %s110 = sphi 0, %s110
      %s112 = sphi 0, %s110
      %s113 = sphi 0, %s112
      %s127 = sphi 0, %s113
      %s131 = sphi 0, %s131
      %s133 = sphi 0, %s131
      %s134 = sphi 0, %s133
      %s148 = sphi 0, %s134
      %s152 = sphi 0, %s152
      %s154 = sphi 0, %s152
      %s155 = sphi 0, %s154
      %s169 = sphi 0, %s155
      %s175 = sphi 0, %s177
      %s178 = sphi 0, %s175
      %s179 = sphi 0, %s178
      %s195 = sphi 0, %s179
    $region4: #{_qnet_forward_impl.1} parent=1 // loop_header_branch
      %16 = sbr.rel (%p14) target = $region8
    $region5: #{_qnet_forward_impl.1} parent=1 // loop_body
      %s18 = ssub.s32 %s13, 1
      %s19 = ssub.s32 %s13, 2
      %s20 = sadd.s32 %s13, 1
      %s21 = ssub.s32 %s13, %s20
      %p22 = scmp.eq.s32.totalorder %s21, 0
      %s24 = sadd.s32 %s23, 1
      %s25 = scalar_select %p22, %s23, %s24
      %p28 = pneg %p22
      %p29 = scmp.eq.s32.totalorder %s13, 2
      %p30 = por %p28, %p29
      %p31 = scmp.ne.s32.totalorder %s23, %s26
      %p32 = scmp.eq.s32.totalorder %s13, 0
      %p33 = por %p31, %p32
      %p34 = scmp.ne.s32.totalorder %s23, %s26
      %p35 = scmp.eq.s32.totalorder %s18, 2
      %p36 = por %p34, %p35
      %p37 = scmp.ne.s32.totalorder %s26, %s27
      %p38 = scmp.eq.s32.totalorder %s18, 0
      %p39 = por %p37, %p38
      %p40 = scmp.ne.s32.totalorder %s26, %s27
      %p41 = scmp.eq.s32.totalorder %s19, 2
      %p42 = por %p40, %p41
      %p44 = scmp.ne.s32.totalorder %s27, %s43
      %p45 = scmp.eq.s32.totalorder %s19, 0
      %p46 = por %p44, %p45
      %s48 = sadd.s32 %s47, 1
      %p51 = scmp.eq.s32.totalorder %s13, 2
      %p52 = scmp.ne.s32.totalorder %s47, %s49
      %p53 = scmp.eq.s32.totalorder %s13, 0
      %p54 = por %p52, %p53
      %p55 = scmp.ne.s32.totalorder %s47, %s49
      %p56 = scmp.eq.s32.totalorder %s18, 2
      %p57 = por %p55, %p56
      %p58 = scmp.ne.s32.totalorder %s49, %s50
      %p59 = scmp.eq.s32.totalorder %s18, 0
      %p60 = por %p58, %p59
      %p61 = scmp.ne.s32.totalorder %s49, %s50
      %p62 = scmp.eq.s32.totalorder %s19, 2
      %p63 = por %p61, %p62
      %p65 = scmp.ne.s32.totalorder %s50, %s64
      %p66 = scmp.eq.s32.totalorder %s19, 0
      %p67 = por %p65, %p66
      %s69 = sadd.s32 %s68, 1
      %p72 = scmp.eq.s32.totalorder %s13, 2
      %p73 = scmp.ne.s32.totalorder %s68, %s70
      %p74 = scmp.eq.s32.totalorder %s13, 0
      %p75 = por %p73, %p74
      %p76 = scmp.ne.s32.totalorder %s68, %s70
      %p77 = scmp.eq.s32.totalorder %s18, 2
      %p78 = por %p76, %p77
      %p79 = scmp.ne.s32.totalorder %s70, %s71
      %p80 = scmp.eq.s32.totalorder %s18, 0
      %p81 = por %p79, %p80
      %p82 = scmp.ne.s32.totalorder %s70, %s71
      %p83 = scmp.eq.s32.totalorder %s19, 2
      %p84 = por %p82, %p83
      %p86 = scmp.ne.s32.totalorder %s71, %s85
      %p87 = scmp.eq.s32.totalorder %s19, 0
      %p88 = por %p86, %p87
      %s90 = sadd.s32 %s89, 1
      %p93 = scmp.eq.s32.totalorder %s13, 2
      %p94 = scmp.ne.s32.totalorder %s89, %s91
      %p95 = scmp.eq.s32.totalorder %s13, 0
      %p96 = por %p94, %p95
      %p97 = scmp.ne.s32.totalorder %s89, %s91
      %p98 = scmp.eq.s32.totalorder %s18, 2
      %p99 = por %p97, %p98
      %p100 = scmp.ne.s32.totalorder %s91, %s92
      %p101 = scmp.eq.s32.totalorder %s18, 0
      %p102 = por %p100, %p101
      %p103 = scmp.ne.s32.totalorder %s91, %s92
      %p104 = scmp.eq.s32.totalorder %s19, 2
      %p105 = por %p103, %p104
      %p107 = scmp.ne.s32.totalorder %s92, %s106
      %p108 = scmp.eq.s32.totalorder %s19, 0
      %p109 = por %p107, %p108
      %s111 = sadd.s32 %s110, 1
      %p114 = scmp.eq.s32.totalorder %s13, 2
      %p115 = scmp.ne.s32.totalorder %s110, %s112
      %p116 = scmp.eq.s32.totalorder %s13, 0
      %p117 = por %p115, %p116
      %p118 = scmp.ne.s32.totalorder %s110, %s112
      %p119 = scmp.eq.s32.totalorder %s18, 2
      %p120 = por %p118, %p119
      %p121 = scmp.ne.s32.totalorder %s112, %s113
      %p122 = scmp.eq.s32.totalorder %s18, 0
      %p123 = por %p121, %p122
      %p124 = scmp.ne.s32.totalorder %s112, %s113
      %p125 = scmp.eq.s32.totalorder %s19, 2
      %p126 = por %p124, %p125
      %p128 = scmp.ne.s32.totalorder %s113, %s127
      %p129 = scmp.eq.s32.totalorder %s19, 0
      %p130 = por %p128, %p129
      %s132 = sadd.s32 %s131, 1
      %p135 = scmp.eq.s32.totalorder %s13, 2
      %p136 = scmp.ne.s32.totalorder %s131, %s133
      %p137 = scmp.eq.s32.totalorder %s13, 0
      %p138 = por %p136, %p137
      %p139 = scmp.ne.s32.totalorder %s131, %s133
      %p140 = scmp.eq.s32.totalorder %s18, 2
      %p141 = por %p139, %p140
      %p142 = scmp.ne.s32.totalorder %s133, %s134
      %p143 = scmp.eq.s32.totalorder %s18, 0
      %p144 = por %p142, %p143
      %p145 = scmp.ne.s32.totalorder %s133, %s134
      %p146 = scmp.eq.s32.totalorder %s19, 2
      %p147 = por %p145, %p146
      %p149 = scmp.ne.s32.totalorder %s134, %s148
      %p150 = scmp.eq.s32.totalorder %s19, 0
      %p151 = por %p149, %p150
      %s153 = sadd.s32 %s152, 1
      %p156 = scmp.eq.s32.totalorder %s13, 2
      %p157 = scmp.ne.s32.totalorder %s152, %s154
      %p158 = scmp.eq.s32.totalorder %s13, 0
      %p159 = por %p157, %p158
      %p160 = scmp.ne.s32.totalorder %s152, %s154
      %p161 = scmp.eq.s32.totalorder %s18, 2
      %p162 = por %p160, %p161
      %p163 = scmp.ne.s32.totalorder %s154, %s155
      %p164 = scmp.eq.s32.totalorder %s18, 0
      %p165 = por %p163, %p164
      %p166 = scmp.ne.s32.totalorder %s154, %s155
      %p167 = scmp.eq.s32.totalorder %s19, 2
      %p168 = por %p166, %p167
      %p170 = scmp.ne.s32.totalorder %s155, %s169
      %p171 = scmp.eq.s32.totalorder %s19, 0
      %p172 = por %p170, %p171
      %s173 = ssub.s32 %s13, %s20
      %p174 = scmp.eq.s32.totalorder %s173, 0
      %s176 = sadd.s32 %s175, 1
      %s177 = scalar_select %p174, %s175, %s176
      %p180 = pneg %p174
      %p181 = scmp.eq.s32.totalorder %s13, 2
      %p182 = por %p180, %p181
      %p183 = scmp.ne.s32.totalorder %s175, %s178
      %p184 = scmp.eq.s32.totalorder %s13, 0
      %p185 = por %p183, %p184
      %p186 = scmp.ne.s32.totalorder %s175, %s178
      %p187 = scmp.eq.s32.totalorder %s18, 2
      %p188 = por %p186, %p187
      %p189 = scmp.ne.s32.totalorder %s178, %s179
      %p190 = scmp.eq.s32.totalorder %s18, 0
      %p191 = por %p189, %p190
      %p192 = scmp.ne.s32.totalorder %s178, %s179
      %p193 = scmp.eq.s32.totalorder %s19, 2
      %p194 = por %p192, %p193
      %p196 = scmp.ne.s32.totalorder %s179, %s195
      %p197 = scmp.eq.s32.totalorder %s19, 0
      %p198 = por %p196, %p197
      %p199 = scmp.le.s32.totalorder 1, %s13
      %p200 = scmp.lt.s32.totalorder %s13, 4
      %p201 = pnand %p199, %p200
      %p202 = pneg %p201
      // Predicated region
      $region9: #{_qnet_forward_impl.1} parent=5 // pred_check
        _
      $region10: #{_qnet_forward_impl.1} parent=5 // pred_check_branch
        %204 = sbr.rel (%p201) target = $region12
      $region11: #{_qnet_forward_impl.1} parent=5 // pred_region
        %s205 = ssub.s32 %s13, 1
        // Predicated region
        $region13: #{_qnet_forward_impl.1} parent=11 // pred_check
          %p206 = pneg %p60
        $region14: #{_qnet_forward_impl.1} parent=11 // pred_check_branch
          %208 = sbr.rel (%p206) target = $region16
        $region15: #{_qnet_forward_impl.1} parent=11 // pred_region
          _
        $region16: #{_qnet_forward_impl.1} parent=11 // pred_fallthru
          _
        // Predicated region
        $region17: #{_qnet_forward_impl.1} parent=11 // pred_check
          %p209 = pneg %p81
        $region18: #{_qnet_forward_impl.1} parent=11 // pred_check_branch
          %211 = sbr.rel (%p209) target = $region20
        $region19: #{_qnet_forward_impl.1} parent=11 // pred_region
          _
        $region20: #{_qnet_forward_impl.1} parent=11 // pred_fallthru
          _
        // Predicated region
        $region21: #{_qnet_forward_impl.1} parent=11 // pred_check
          %p212 = pneg %p102
        $region22: #{_qnet_forward_impl.1} parent=11 // pred_check_branch
          %214 = sbr.rel (%p212) target = $region24
        $region23: #{_qnet_forward_impl.1} parent=11 // pred_region
          _
        $region24: #{_qnet_forward_impl.1} parent=11 // pred_fallthru
          _
        // Predicated region
        $region25: #{_qnet_forward_impl.1} parent=11 // pred_check
          %p215 = pneg %p123
        $region26: #{_qnet_forward_impl.1} parent=11 // pred_check_branch
          %217 = sbr.rel (%p215) target = $region28
        $region27: #{_qnet_forward_impl.1} parent=11 // pred_region
          _
        $region28: #{_qnet_forward_impl.1} parent=11 // pred_fallthru
          _
        // Predicated region
        $region29: #{_qnet_forward_impl.1} parent=11 // pred_check
          %p218 = pneg %p144
        $region30: #{_qnet_forward_impl.1} parent=11 // pred_check_branch
          %220 = sbr.rel (%p218) target = $region32
        $region31: #{_qnet_forward_impl.1} parent=11 // pred_region
          _
        $region32: #{_qnet_forward_impl.1} parent=11 // pred_fallthru
          _
        // Predicated region
        $region33: #{_qnet_forward_impl.1} parent=11 // pred_check
          %p221 = pneg %p165
        $region34: #{_qnet_forward_impl.1} parent=11 // pred_check_branch
          %223 = sbr.rel (%p221) target = $region36
        $region35: #{_qnet_forward_impl.1} parent=11 // pred_region
          _
        $region36: #{_qnet_forward_impl.1} parent=11 // pred_fallthru
          _
      $region12: #{_qnet_forward_impl.1} parent=5 // pred_fallthru
        _
      %p224 = scmp.lt.s32.totalorder %s13, 3
      // Predicated region
      $region37: #{_qnet_forward_impl.1} parent=5 // pred_check
        %p225 = pneg %p224
      $region38: #{_qnet_forward_impl.1} parent=5 // pred_check_branch
        %227 = sbr.rel (%p225) target = $region40
      $region39: #{_qnet_forward_impl.1} parent=5 // pred_region
        // Predicated region
        $region41: #{_qnet_forward_impl.1} parent=39 // pred_check
          %p228 = pneg %p33
        $region42: #{_qnet_forward_impl.1} parent=39 // pred_check_branch
          %230 = sbr.rel (%p228) target = $region44
        $region43: #{_qnet_forward_impl.1} parent=39 // pred_region
          %s231 = smul.u32 2, %s13
          %p232 = scmp.lt.s32.totalorder %s231, 5
          %s233 = scalar_select %p232, %s231, 5
          %s234 = smul.addr %s233, 8
          %s235 = scalar_lea.vmem %s0, %s234
          %s236 = smul.u32 2, %s13
        $region44: #{_qnet_forward_impl.1} parent=39 // pred_fallthru
          _
      $region40: #{_qnet_forward_impl.1} parent=5 // pred_fallthru
        _
      %p237 = scmp.le.s32.totalorder 1, %s13
      %p238 = scmp.lt.s32.totalorder %s13, 4
      %p239 = pnand %p237, %p238
      %p240 = pneg %p239
      // Predicated region
      $region45: #{_qnet_forward_impl.1} parent=5 // pred_check
        _
      $region46: #{_qnet_forward_impl.1} parent=5 // pred_check_branch
        %242 = sbr.rel (%p239) target = $region48
      $region47: #{_qnet_forward_impl.1} parent=5 // pred_region
        %s243 = ssub.s32 %s13, 1
        %s244 = smul.u32 2, %s18
        %p245 = scmp.lt.s32.totalorder %s244, 5
        %s246 = scalar_select %p245, %s244, 5
        %s247 = smul.addr %s246, 8
        %s248 = scalar_lea.vmem %s0, %s247
        %p249 = pneg %p39
        %p250 = pneg %p36
        %p251 = pneg %p60
        %p252 = pneg %p57
        %p253 = pneg %p81
        %p254 = pneg %p78
        %p255 = pneg %p102
        %p256 = pneg %p99
        %p257 = pneg %p123
        %p258 = pneg %p120
        %p259 = pneg %p144
        %p260 = pneg %p141
        %p261 = pneg %p165
        %p262 = pneg %p162
        %p263 = pneg %p191
        %p264 = pneg %p188
        %s265 = sand.u32 %s178, 1
        %s266 = sand.u32 %s178, 1
        %s267 = smul.addr %s266, 32
        %s268 = scalar_lea.vmem [#allocation2], %s267
        %s269 = smul.u32 2, %s18
        %p270 = scmp.lt.s32.totalorder %s269, 5
        %s271 = scalar_select %p270, %s269, 5
        %s272 = smul.addr %s271, 8
        %s273 = scalar_lea.vmem %s0, %s272
        %s274 = smul.u32 2, %s18
        %s275 = smul.u32 2, %s18
        %v277 = vld [vmem:[%s273] sm:$0xff]
        %v278 = vld [vmem:[%s273 + $0x8] sm:$0xff]
        %v279 = vpack.c.bf16 %v278, %v277
        %v280 = vld [vmem:[%s1] sm:$0xf]
        %v281 = vld [vmem:[%s1 + $0x4] sm:$0xf]
        %v282 = vld [vmem:[%s2] sm:$0x1]
        %v284 = vlaneseq
        %v285 = vshrl.u32 %v284, 7
        %v286 = vsub.s32 0, %v285
        %v287 = vrot.slane %v282, %v286
        %v291 = vunpack.c.l.b16 %v280
        %v292 = vunpack.c.l.b16 %v281
        %v293 = vpack.c.b16 %v292, %v291
        %vm295 = vcmask 130048
        %v297 = vsel %vm295, %v279, 0
        %299 = vmatprep.subr.bf16.mxu0 0
        %300 = vmatpush1.bf16.msra.mxu0 %v293
        %301 = vmatprep.subr.bf16.mxu0 0
        %302 = vmatpush1.bf16.msra.mxu0 0
        %303 = vmatprep.subr.bf16.mxu0 0
        %304 = vmatpush1.bf16.msra.mxu0 0
        %305 = vmatprep.subr.bf16.mxu0 0
        %306 = vmatpush1.bf16.msra.mxu0 0
        %307 = vmatprep.subr.bf16.mxu0 0
        %308 = vmatpush1.bf16.msra.mxu0 0
        %309 = vmatprep.subr.bf16.mxu0 0
        %310 = vmatpush1.bf16.msra.mxu0 0
        %311 = vmatprep.subr.bf16.mxu0 0
        %312 = vmatpush1.bf16.msra.mxu0 0
        %313 = vmatprep.subr.bf16.mxu0 0
        %314 = vmatpush1.bf16.msra.mxu0 0
        %315 = vmatprep.subr.bf16.mxu0 0
        %316 = vmatpush1.bf16.msra.mxu0 0
        %317 = vmatprep.subr.bf16.mxu0 0
        %318 = vmatpush1.bf16.msra.mxu0 0
        %319 = vmatprep.subr.bf16.mxu0 0
        %320 = vmatpush1.bf16.msra.mxu0 0
        %321 = vmatprep.subr.bf16.mxu0 0
        %322 = vmatpush1.bf16.msra.mxu0 0
        %323 = vmatprep.subr.bf16.mxu0 0
        %324 = vmatpush1.bf16.msra.mxu0 0
        %325 = vmatprep.subr.bf16.mxu0 0
        %326 = vmatpush1.bf16.msra.mxu0 0
        %327 = vmatprep.subr.bf16.mxu0 0
        %328 = vmatpush1.bf16.msra.mxu0 0
        %329 = vmatprep.subr.bf16.mxu0 0
        %330 = vmatpush1.bf16.msra.mxu0 0
        %331 = vmatprep.mubr.bf16.mxu0 0
        %332 = vmatmul.mubr.bf16.gmra.mrb[0].mxu0 %v297
        %v333 = vpop.f32.mrb[0].mxu0
        %v334 = vadd.f32 %v287, %v333
        %v335 = vpop.f32.mrb[0].mxu0
        %v336 = vpop.f32.mrb[0].mxu0
        %v337 = vadd.f32 %v287, %v336
        %v338 = vpop.f32.mrb[0].mxu0
        %339 = vdwg.mxu0
        %v340 = vmax.f32 %v334, 0.0
        %v341 = vmax.f32 %v337, 0.0
        %v342 = vpack.c.bf16 %v341, %v340
        %v343 = vld [vmem:[%s3] sm:$0xf]
        %v344 = vld [vmem:[%s3 + $0x4] sm:$0xf]
        %v345 = vld [vmem:[%s3 + $0x8] sm:$0xf]
        %v346 = vld [vmem:[%s3 + $0xc] sm:$0xf]
        %v347 = vld [vmem:[%s3 + $0x10] sm:$0xf]
        %v348 = vld [vmem:[%s3 + $0x14] sm:$0xf]
        %v349 = vld [vmem:[%s3 + $0x18] sm:$0xf]
        %v350 = vld [vmem:[%s3 + $0x1c] sm:$0xf]
        %v351 = vld [vmem:[%s3 + $0x20] sm:$0xf]
        %v352 = vld [vmem:[%s3 + $0x24] sm:$0xf]
        %v353 = vld [vmem:[%s3 + $0x28] sm:$0xf]
        %v354 = vld [vmem:[%s3 + $0x2c] sm:$0xf]
        %v355 = vld [vmem:[%s3 + $0x30] sm:$0xf]
        %v356 = vld [vmem:[%s3 + $0x34] sm:$0xf]
        %v357 = vld [vmem:[%s3 + $0x38] sm:$0xf]
        %v358 = vld [vmem:[%s3 + $0x3c] sm:$0xf]
        %v359 = vld [vmem:[%s4] sm:$0x1]
        %v361 = vlaneseq
        %v362 = vshrl.u32 %v361, 7
        %v363 = vsub.s32 0, %v362
        %v364 = vrot.slane %v359, %v363
        %v382 = vunpack.c.l.b16 %v343
        %v383 = vunpack.c.l.b16 %v344
        %v384 = vunpack.c.l.b16 %v345
        %v385 = vunpack.c.l.b16 %v346
        %v386 = vunpack.c.l.b16 %v347
        %v387 = vunpack.c.l.b16 %v348
        %v388 = vunpack.c.l.b16 %v349
        %v389 = vunpack.c.l.b16 %v350
        %v390 = vunpack.c.l.b16 %v351
        %v391 = vunpack.c.l.b16 %v352
        %v392 = vunpack.c.l.b16 %v353
        %v393 = vunpack.c.l.b16 %v354
        %v394 = vunpack.c.l.b16 %v355
        %v395 = vunpack.c.l.b16 %v356
        %v396 = vunpack.c.l.b16 %v357
        %v397 = vunpack.c.l.b16 %v358
        %v398 = vpack.c.b16 %v383, %v382
        %v399 = vpack.c.b16 %v385, %v384
        %v400 = vpack.c.b16 %v387, %v386
        %v401 = vpack.c.b16 %v389, %v388
        %v402 = vpack.c.b16 %v391, %v390
        %v403 = vpack.c.b16 %v393, %v392
        %v404 = vpack.c.b16 %v395, %v394
        %v405 = vpack.c.b16 %v397, %v396
        %414 = vmatprep.subr.bf16.mxu0 0
        %415 = vmatpush1.bf16.msra.mxu0 %v398
        %416 = vmatprep.subr.bf16.mxu0 0
        %417 = vmatpush1.bf16.msra.mxu0 %v399
        %418 = vmatprep.subr.bf16.mxu0 0
        %419 = vmatpush1.bf16.msra.mxu0 %v400
        %420 = vmatprep.subr.bf16.mxu0 0
        %421 = vmatpush1.bf16.msra.mxu0 %v401
        %422 = vmatprep.subr.bf16.mxu0 0
        %423 = vmatpush1.bf16.msra.mxu0 %v402
        %424 = vmatprep.subr.bf16.mxu0 0
        %425 = vmatpush1.bf16.msra.mxu0 %v403
        %426 = vmatprep.subr.bf16.mxu0 0
        %427 = vmatpush1.bf16.msra.mxu0 %v404
        %428 = vmatprep.subr.bf16.mxu0 0
        %429 = vmatpush1.bf16.msra.mxu0 %v405
        %430 = vmatprep.subr.bf16.mxu0 0
        %431 = vmatpush1.bf16.msra.mxu0 0
        %432 = vmatprep.subr.bf16.mxu0 0
        %433 = vmatpush1.bf16.msra.mxu0 0
        %434 = vmatprep.subr.bf16.mxu0 0
        %435 = vmatpush1.bf16.msra.mxu0 0
        %436 = vmatprep.subr.bf16.mxu0 0
        %437 = vmatpush1.bf16.msra.mxu0 0
        %438 = vmatprep.subr.bf16.mxu0 0
        %439 = vmatpush1.bf16.msra.mxu0 0
        %440 = vmatprep.subr.bf16.mxu0 0
        %441 = vmatpush1.bf16.msra.mxu0 0
        %442 = vmatprep.subr.bf16.mxu0 0
        %443 = vmatpush1.bf16.msra.mxu0 0
        %444 = vmatprep.subr.bf16.mxu0 0
        %445 = vmatpush1.bf16.msra.mxu0 0
        %446 = vmatprep.mubr.bf16.mxu0 0
        %447 = vmatmul.mubr.bf16.gmra.mrb[0].mxu0 %v342
        %v448 = vpop.f32.mrb[0].mxu0
        %v449 = vadd.f32 %v364, %v448
        %v450 = vpop.f32.mrb[0].mxu0
        %v451 = vpop.f32.mrb[0].mxu0
        %v452 = vadd.f32 %v364, %v451
        %v453 = vpop.f32.mrb[0].mxu0
        %454 = vdwg.mxu0
        %v455 = vmax.f32 %v449, 0.0
        %v456 = vmax.f32 %v452, 0.0
        %v457 = vpack.c.bf16 %v456, %v455
        %v458 = vld [vmem:[%s5] sm:$0xf]
        %v459 = vld [vmem:[%s5 + $0x4] sm:$0xf]
        %v460 = vld [vmem:[%s5 + $0x8] sm:$0xf]
        %v461 = vld [vmem:[%s5 + $0xc] sm:$0xf]
        %v462 = vld [vmem:[%s5 + $0x10] sm:$0xf]
        %v463 = vld [vmem:[%s5 + $0x14] sm:$0xf]
        %v464 = vld [vmem:[%s5 + $0x18] sm:$0xf]
        %v465 = vld [vmem:[%s5 + $0x1c] sm:$0xf]
        %v466 = vld [vmem:[%s6] sm:$0x1]
        %v468 = vlaneseq
        %v469 = vshrl.u32 %v468, 7
        %v470 = vsub.s32 0, %v469
        %v471 = vrot.slane %v466, %v470
        %v481 = vunpack.c.l.b16 %v458
        %v482 = vunpack.c.l.b16 %v459
        %v483 = vunpack.c.l.b16 %v460
        %v484 = vunpack.c.l.b16 %v461
        %v485 = vunpack.c.l.b16 %v462
        %v486 = vunpack.c.l.b16 %v463
        %v487 = vunpack.c.l.b16 %v464
        %v488 = vunpack.c.l.b16 %v465
        %v489 = vpack.c.b16 %v482, %v481
        %v490 = vpack.c.b16 %v484, %v483
        %v491 = vpack.c.b16 %v486, %v485
        %v492 = vpack.c.b16 %v488, %v487
        %vm497 = vcmask 523264
        %v499 = vsel %vm497, %v457, 0
        %501 = vmatprep.subr.bf16.mxu0 0
        %502 = vmatpush1.bf16.msra.mxu0 %v489
        %503 = vmatprep.subr.bf16.mxu0 0
        %504 = vmatpush1.bf16.msra.mxu0 %v490
        %505 = vmatprep.subr.bf16.mxu0 0
        %506 = vmatpush1.bf16.msra.mxu0 %v491
        %507 = vmatprep.subr.bf16.mxu0 0
        %508 = vmatpush1.bf16.msra.mxu0 %v492
        %509 = vmatprep.subr.bf16.mxu0 0
        %510 = vmatpush1.bf16.msra.mxu0 0
        %511 = vmatprep.subr.bf16.mxu0 0
        %512 = vmatpush1.bf16.msra.mxu0 0
        %513 = vmatprep.subr.bf16.mxu0 0
        %514 = vmatpush1.bf16.msra.mxu0 0
        %515 = vmatprep.subr.bf16.mxu0 0
        %516 = vmatpush1.bf16.msra.mxu0 0
        %517 = vmatprep.subr.bf16.mxu0 0
        %518 = vmatpush1.bf16.msra.mxu0 0
        %519 = vmatprep.subr.bf16.mxu0 0
        %520 = vmatpush1.bf16.msra.mxu0 0
        %521 = vmatprep.subr.bf16.mxu0 0
        %522 = vmatpush1.bf16.msra.mxu0 0
        %523 = vmatprep.subr.bf16.mxu0 0
        %524 = vmatpush1.bf16.msra.mxu0 0
        %525 = vmatprep.subr.bf16.mxu0 0
        %526 = vmatpush1.bf16.msra.mxu0 0
        %527 = vmatprep.subr.bf16.mxu0 0
        %528 = vmatpush1.bf16.msra.mxu0 0
        %529 = vmatprep.subr.bf16.mxu0 0
        %530 = vmatpush1.bf16.msra.mxu0 0
        %531 = vmatprep.subr.bf16.mxu0 0
        %532 = vmatpush1.bf16.msra.mxu0 0
        %533 = vmatprep.mubr.bf16.mxu0 0
        %534 = vmatmul.mubr.bf16.gmra.mrb[0].mxu0 %v499
        %v535 = vpop.f32.mrb[0].mxu0
        %v536 = vadd.f32 %v471, %v535
        %v537 = vpop.f32.mrb[0].mxu0
        %v538 = vpop.f32.mrb[0].mxu0
        %v539 = vadd.f32 %v471, %v538
        %v540 = vpop.f32.mrb[0].mxu0
        %541 = vdwg.mxu0
        %vm542 = vcmask 39936
        %543 = vst.msk [vmem:[%s268] sm:$0xff] %vm542, %v536
        %544 = vst.msk [vmem:[%s268 + $0x8] sm:$0xff] %vm542, %v539
        %v545 = vld [vmem:[%s273] sm:$0xff]
        %v546 = vld [vmem:[%s273 + $0x8] sm:$0xff]
        %v547 = vpack.c.bf16 %v546, %v545
        %s548 = scalar_lea.vmem %s1, 8
        %v549 = vld [vmem:[%s548] sm:$0xf]
        %v550 = vld [vmem:[%s548 + $0x4] sm:$0xf]
        %s551 = scalar_lea.vmem %s2, 1
        %v552 = vld [vmem:[%s551] sm:$0x1]
        %v554 = vlaneseq
        %v555 = vshrl.u32 %v554, 7
        %v556 = vsub.s32 0, %v555
        %v557 = vrot.slane %v552, %v556
        %560 = vrot.lane.b32.xlu0 %v547, 112
        %v561 = vpop.permute.xlu0 %560
        %v564 = vunpack.c.l.b16 %v549
        %v565 = vunpack.c.l.b16 %v550
        %v566 = vpack.c.b16 %v565, %v564
        %v569 = vsel %vm295, %v561, 0
        %571 = vmatprep.subr.bf16.mxu0 0
        %572 = vmatpush1.bf16.msra.mxu0 %v566
        %573 = vmatprep.subr.bf16.mxu0 0
        %574 = vmatpush1.bf16.msra.mxu0 0
        %575 = vmatprep.subr.bf16.mxu0 0
        %576 = vmatpush1.bf16.msra.mxu0 0
        %577 = vmatprep.subr.bf16.mxu0 0
        %578 = vmatpush1.bf16.msra.mxu0 0
        %579 = vmatprep.subr.bf16.mxu0 0
        %580 = vmatpush1.bf16.msra.mxu0 0
        %581 = vmatprep.subr.bf16.mxu0 0
        %582 = vmatpush1.bf16.msra.mxu0 0
        %583 = vmatprep.subr.bf16.mxu0 0
        %584 = vmatpush1.bf16.msra.mxu0 0
        %585 = vmatprep.subr.bf16.mxu0 0
        %586 = vmatpush1.bf16.msra.mxu0 0
        %587 = vmatprep.subr.bf16.mxu0 0
        %588 = vmatpush1.bf16.msra.mxu0 0
        %589 = vmatprep.subr.bf16.mxu0 0
        %590 = vmatpush1.bf16.msra.mxu0 0
        %591 = vmatprep.subr.bf16.mxu0 0
        %592 = vmatpush1.bf16.msra.mxu0 0
        %593 = vmatprep.subr.bf16.mxu0 0
        %594 = vmatpush1.bf16.msra.mxu0 0
        %595 = vmatprep.subr.bf16.mxu0 0
        %596 = vmatpush1.bf16.msra.mxu0 0
        %597 = vmatprep.subr.bf16.mxu0 0
        %598 = vmatpush1.bf16.msra.mxu0 0
        %599 = vmatprep.subr.bf16.mxu0 0
        %600 = vmatpush1.bf16.msra.mxu0 0
        %601 = vmatprep.subr.bf16.mxu0 0
        %602 = vmatpush1.bf16.msra.mxu0 0
        %603 = vmatprep.mubr.bf16.mxu0 0
        %604 = vmatmul.mubr.bf16.gmra.mrb[0].mxu0 %v569
        %v605 = vpop.f32.mrb[0].mxu0
        %v606 = vadd.f32 %v557, %v605
        %v607 = vpop.f32.mrb[0].mxu0
        %v608 = vpop.f32.mrb[0].mxu0
        %v609 = vadd.f32 %v557, %v608
        %v610 = vpop.f32.mrb[0].mxu0
        %611 = vdwg.mxu0
        %v612 = vmax.f32 %v606, 0.0
        %v613 = vmax.f32 %v609, 0.0
        %v614 = vpack.c.bf16 %v613, %v612
        %s615 = scalar_lea.vmem %s3, 64
        %v616 = vld [vmem:[%s615] sm:$0xf]
        %v617 = vld [vmem:[%s615 + $0x4] sm:$0xf]
        %v618 = vld [vmem:[%s615 + $0x8] sm:$0xf]
        %v619 = vld [vmem:[%s615 + $0xc] sm:$0xf]
        %v620 = vld [vmem:[%s615 + $0x10] sm:$0xf]
        %v621 = vld [vmem:[%s615 + $0x14] sm:$0xf]
        %v622 = vld [vmem:[%s615 + $0x18] sm:$0xf]
        %v623 = vld [vmem:[%s615 + $0x1c] sm:$0xf]
        %v624 = vld [vmem:[%s615 + $0x20] sm:$0xf]
        %v625 = vld [vmem:[%s615 + $0x24] sm:$0xf]
        %v626 = vld [vmem:[%s615 + $0x28] sm:$0xf]
        %v627 = vld [vmem:[%s615 + $0x2c] sm:$0xf]
        %v628 = vld [vmem:[%s615 + $0x30] sm:$0xf]
        %v629 = vld [vmem:[%s615 + $0x34] sm:$0xf]
        %v630 = vld [vmem:[%s615 + $0x38] sm:$0xf]
        %v631 = vld [vmem:[%s615 + $0x3c] sm:$0xf]
        %s632 = scalar_lea.vmem %s4, 1
        %v633 = vld [vmem:[%s632] sm:$0x1]
        %v635 = vlaneseq
        %v636 = vshrl.u32 %v635, 7
        %v637 = vsub.s32 0, %v636
        %v638 = vrot.slane %v633, %v637
        %v656 = vunpack.c.l.b16 %v616
        %v657 = vunpack.c.l.b16 %v617
        %v658 = vunpack.c.l.b16 %v618
        %v659 = vunpack.c.l.b16 %v619
        %v660 = vunpack.c.l.b16 %v620
        %v661 = vunpack.c.l.b16 %v621
        %v662 = vunpack.c.l.b16 %v622
        %v663 = vunpack.c.l.b16 %v623
        %v664 = vunpack.c.l.b16 %v624
        %v665 = vunpack.c.l.b16 %v625
        %v666 = vunpack.c.l.b16 %v626
        %v667 = vunpack.c.l.b16 %v627
        %v668 = vunpack.c.l.b16 %v628
        %v669 = vunpack.c.l.b16 %v629
        %v670 = vunpack.c.l.b16 %v630
        %v671 = vunpack.c.l.b16 %v631
        %v672 = vpack.c.b16 %v657, %v656
        %v673 = vpack.c.b16 %v659, %v658
        %v674 = vpack.c.b16 %v661, %v660
        %v675 = vpack.c.b16 %v663, %v662
        %v676 = vpack.c.b16 %v665, %v664
        %v677 = vpack.c.b16 %v667, %v666
        %v678 = vpack.c.b16 %v669, %v668
        %v679 = vpack.c.b16 %v671, %v670
        %688 = vmatprep.subr.bf16.mxu0 0
        %689 = vmatpush1.bf16.msra.mxu0 %v672
        %690 = vmatprep.subr.bf16.mxu0 0
        %691 = vmatpush1.bf16.msra.mxu0 %v673
        %692 = vmatprep.subr.bf16.mxu0 0
        %693 = vmatpush1.bf16.msra.mxu0 %v674
        %694 = vmatprep.subr.bf16.mxu0 0
        %695 = vmatpush1.bf16.msra.mxu0 %v675
        %696 = vmatprep.subr.bf16.mxu0 0
        %697 = vmatpush1.bf16.msra.mxu0 %v676
        %698 = vmatprep.subr.bf16.mxu0 0
        %699 = vmatpush1.bf16.msra.mxu0 %v677
        %700 = vmatprep.subr.bf16.mxu0 0
        %701 = vmatpush1.bf16.msra.mxu0 %v678
        %702 = vmatprep.subr.bf16.mxu0 0
        %703 = vmatpush1.bf16.msra.mxu0 %v679
        %704 = vmatprep.subr.bf16.mxu0 0
        %705 = vmatpush1.bf16.msra.mxu0 0
        %706 = vmatprep.subr.bf16.mxu0 0
        %707 = vmatpush1.bf16.msra.mxu0 0
        %708 = vmatprep.subr.bf16.mxu0 0
        %709 = vmatpush1.bf16.msra.mxu0 0
        %710 = vmatprep.subr.bf16.mxu0 0
        %711 = vmatpush1.bf16.msra.mxu0 0
        %712 = vmatprep.subr.bf16.mxu0 0
        %713 = vmatpush1.bf16.msra.mxu0 0
        %714 = vmatprep.subr.bf16.mxu0 0
        %715 = vmatpush1.bf16.msra.mxu0 0
        %716 = vmatprep.subr.bf16.mxu0 0
        %717 = vmatpush1.bf16.msra.mxu0 0
        %718 = vmatprep.subr.bf16.mxu0 0
        %719 = vmatpush1.bf16.msra.mxu0 0
        %720 = vmatprep.mubr.bf16.mxu0 0
        %721 = vmatmul.mubr.bf16.gmra.mrb[0].mxu0 %v614
        %v722 = vpop.f32.mrb[0].mxu0
        %v723 = vadd.f32 %v638, %v722
        %v724 = vpop.f32.mrb[0].mxu0
        %v725 = vpop.f32.mrb[0].mxu0
        %v726 = vadd.f32 %v638, %v725
        %v727 = vpop.f32.mrb[0].mxu0
        %728 = vdwg.mxu0
        %v729 = vmax.f32 %v723, 0.0
        %v730 = vmax.f32 %v726, 0.0
        %v731 = vpack.c.bf16 %v730, %v729
        %s732 = scalar_lea.vmem %s5, 32
        %v733 = vld [vmem:[%s732] sm:$0xf]
        %v734 = vld [vmem:[%s732 + $0x4] sm:$0xf]
        %v735 = vld [vmem:[%s732 + $0x8] sm:$0xf]
        %v736 = vld [vmem:[%s732 + $0xc] sm:$0xf]
        %v737 = vld [vmem:[%s732 + $0x10] sm:$0xf]
        %v738 = vld [vmem:[%s732 + $0x14] sm:$0xf]
        %v739 = vld [vmem:[%s732 + $0x18] sm:$0xf]
        %v740 = vld [vmem:[%s732 + $0x1c] sm:$0xf]
        %s741 = scalar_lea.vmem %s6, 1
        %v742 = vld [vmem:[%s741] sm:$0x1]
        %v744 = vlaneseq
        %v745 = vshrl.u32 %v744, 7
        %v746 = vsub.s32 0, %v745
        %v747 = vrot.slane %v742, %v746
        %v757 = vunpack.c.l.b16 %v733
        %v758 = vunpack.c.l.b16 %v734
        %v759 = vunpack.c.l.b16 %v735
        %v760 = vunpack.c.l.b16 %v736
        %v761 = vunpack.c.l.b16 %v737
        %v762 = vunpack.c.l.b16 %v738
        %v763 = vunpack.c.l.b16 %v739
        %v764 = vunpack.c.l.b16 %v740
        %v765 = vpack.c.b16 %v758, %v757
        %v766 = vpack.c.b16 %v760, %v759
        %v767 = vpack.c.b16 %v762, %v761
        %v768 = vpack.c.b16 %v764, %v763
        %v774 = vsel %vm497, %v731, 0
        %776 = vmatprep.subr.bf16.mxu0 0
        %777 = vmatpush1.bf16.msra.mxu0 %v765
        %778 = vmatprep.subr.bf16.mxu0 0
        %779 = vmatpush1.bf16.msra.mxu0 %v766
        %780 = vmatprep.subr.bf16.mxu0 0
        %781 = vmatpush1.bf16.msra.mxu0 %v767
        %782 = vmatprep.subr.bf16.mxu0 0
        %783 = vmatpush1.bf16.msra.mxu0 %v768
        %784 = vmatprep.subr.bf16.mxu0 0
        %785 = vmatpush1.bf16.msra.mxu0 0
        %786 = vmatprep.subr.bf16.mxu0 0
        %787 = vmatpush1.bf16.msra.mxu0 0
        %788 = vmatprep.subr.bf16.mxu0 0
        %789 = vmatpush1.bf16.msra.mxu0 0
        %790 = vmatprep.subr.bf16.mxu0 0
        %791 = vmatpush1.bf16.msra.mxu0 0
        %792 = vmatprep.subr.bf16.mxu0 0
        %793 = vmatpush1.bf16.msra.mxu0 0
        %794 = vmatprep.subr.bf16.mxu0 0
        %795 = vmatpush1.bf16.msra.mxu0 0
        %796 = vmatprep.subr.bf16.mxu0 0
        %797 = vmatpush1.bf16.msra.mxu0 0
        %798 = vmatprep.subr.bf16.mxu0 0
        %799 = vmatpush1.bf16.msra.mxu0 0
        %800 = vmatprep.subr.bf16.mxu0 0
        %801 = vmatpush1.bf16.msra.mxu0 0
        %802 = vmatprep.subr.bf16.mxu0 0
        %803 = vmatpush1.bf16.msra.mxu0 0
        %804 = vmatprep.subr.bf16.mxu0 0
        %805 = vmatpush1.bf16.msra.mxu0 0
        %806 = vmatprep.subr.bf16.mxu0 0
        %807 = vmatpush1.bf16.msra.mxu0 0
        %808 = vmatprep.mubr.bf16.mxu0 0
        %809 = vmatmul.mubr.bf16.gmra.mrb[0].mxu0 %v774
        %v810 = vpop.f32.mrb[0].mxu0
        %v811 = vadd.f32 %v747, %v810
        %v812 = vpop.f32.mrb[0].mxu0
        %v813 = vpop.f32.mrb[0].mxu0
        %v814 = vadd.f32 %v747, %v813
        %v815 = vpop.f32.mrb[0].mxu0
        %816 = vdwg.mxu0
        %s817 = scalar_lea.vmem %s268, 16 [#allocation2]
        %818 = vst.msk [vmem:[%s817] sm:$0xff] %vm542, %v811
        %819 = vst.msk [vmem:[%s817 + $0x8] sm:$0xff] %vm542, %v814
        %s820 = sand.u32 %s178, 1
        %s821 = sand.u32 %s178, 1
        %s822 = smul.addr %s821, 32
        %s823 = scalar_lea.vmem [#allocation2], %s822
        // Predicated region
        $region49: #{_qnet_forward_impl.1} parent=47 // pred_check
          %p824 = pneg %p188
        $region50: #{_qnet_forward_impl.1} parent=47 // pred_check_branch
          %826 = sbr.rel (%p824) target = $region52
        $region51: #{_qnet_forward_impl.1} parent=47 // pred_region
          %s827 = smul.u32 2, %s18
          %s828 = smul.addr %s827, 8
          %s829 = scalar_lea.vmem %s7, %s828
          // Predicated region
          $region53: #{_qnet_forward_impl.1} parent=51 // pred_check
            _
          $region54: #{_qnet_forward_impl.1} parent=51 // pred_check_branch
            %831 = sbr.rel (0) target = $region56
          $region55: #{_qnet_forward_impl.1} parent=51 // pred_region
            // Predicated region
            $region57: #{_qnet_forward_impl.1} parent=55 // pred_check
              _
            $region58: #{_qnet_forward_impl.1} parent=55 // pred_check_branch
              %833 = sbr.rel (0) target = $region60
            $region59: #{_qnet_forward_impl.1} parent=55 // pred_region
              // Predicated region
              $region72: #{_qnet_forward_impl.1} parent=59 // pred_check
                _
              $region73: #{_qnet_forward_impl.1} parent=59 // pred_check_branch
                %854 = sbr.rel (0) target = $region75
              $region74: #{_qnet_forward_impl.1} parent=59 // pred_region
                loop: start=0, step=1, limit=1
                $region76: #{_qnet_forward_impl.1} parent=74 // loop_pre_header
                  _
                $region77: #{_qnet_forward_impl.1} parent=74 // loop_header
                  %s856 = sphi 0, %s860
                  %p857 = scmp.ge.s32.totalorder %s856, 1
                  %s861 = sphi %s823, %s823
                  %s862 = sphi %s829, %s829
                $region78: #{_qnet_forward_impl.1} parent=74 // loop_header_branch
                  %859 = sbr.rel (%p857) target = $region82
                $region79: #{_qnet_forward_impl.1} parent=74 // loop_body
                  %v863 = vld [vmem:[%s861] sm:$0xff]
                  %864 = vst [vmem:[%s862] sm:$0xff] %v863
                  %v865 = vld [vmem:[%s861 + $0x8] sm:$0xff]
                  %866 = vst [vmem:[%s862 + $0x8] sm:$0xff] %v865
                  %v867 = vld [vmem:[%s861 + $0x10] sm:$0xff]
                  %868 = vst [vmem:[%s862 + $0x30] sm:$0xff] %v867
                  %v869 = vld [vmem:[%s861 + $0x18] sm:$0xff]
                  %870 = vst [vmem:[%s862 + $0x38] sm:$0xff] %v869
                $region80: #{_qnet_forward_impl.1} parent=74 // loop_footer
                  %s860 = sadd.s32 1, %s856
                $region81: #{_qnet_forward_impl.1} parent=74 // loop_footer_branch
                  %855 = sbr.rel target = $region77
                $region82: #{_qnet_forward_impl.1} parent=74 // loop_exit
                  _
              $region75: #{_qnet_forward_impl.1} parent=59 // pred_fallthru
                _
              // Predicated region
              $region83: #{_qnet_forward_impl.1} parent=59 // pred_check
                _
              $region84: #{_qnet_forward_impl.1} parent=59 // pred_check_branch
                %872 = sbr.rel target = $region86
              $region85: #{_qnet_forward_impl.1} parent=59 // pred_region
                _
              $region86: #{_qnet_forward_impl.1} parent=59 // pred_fallthru
                _
            $region60: #{_qnet_forward_impl.1} parent=55 // pred_fallthru
              _
            // Predicated region
            $region61: #{_qnet_forward_impl.1} parent=55 // pred_check
              _
            $region62: #{_qnet_forward_impl.1} parent=55 // pred_check_branch
              %835 = sbr.rel target = $region64
            $region63: #{_qnet_forward_impl.1} parent=55 // pred_region
              loop: start=0, step=1, limit=1
              $region65: #{_qnet_forward_impl.1} parent=63 // loop_pre_header
                _
              $region66: #{_qnet_forward_impl.1} parent=63 // loop_header
                %s838 = sphi 0, %s842
                %p839 = scmp.ge.s32.totalorder %s838, 1
                %s843 = sphi %s823, %s823
                %s844 = sphi %s829, %s829
              $region67: #{_qnet_forward_impl.1} parent=63 // loop_header_branch
                %841 = sbr.rel (%p839) target = $region71
              $region68: #{_qnet_forward_impl.1} parent=63 // loop_body
                %v845 = vld [vmem:[%s843] sm:$0xff]
                %846 = vst [vmem:[%s844] sm:$0xff] %v845
                %v847 = vld [vmem:[%s843 + $0x8] sm:$0xff]
                %848 = vst [vmem:[%s844 + $0x8] sm:$0xff] %v847
                %v849 = vld [vmem:[%s843 + $0x10] sm:$0xff]
                %850 = vst [vmem:[%s844 + $0x30] sm:$0xff] %v849
                %v851 = vld [vmem:[%s843 + $0x18] sm:$0xff]
                %852 = vst [vmem:[%s844 + $0x38] sm:$0xff] %v851
              $region69: #{_qnet_forward_impl.1} parent=63 // loop_footer
                %s842 = sadd.s32 1, %s838
              $region70: #{_qnet_forward_impl.1} parent=63 // loop_footer_branch
                %837 = sbr.rel target = $region66
              $region71: #{_qnet_forward_impl.1} parent=63 // loop_exit
                _
            $region64: #{_qnet_forward_impl.1} parent=55 // pred_fallthru
              _
          $region56: #{_qnet_forward_impl.1} parent=51 // pred_fallthru
            _
          %873 = vnop
        $region52: #{_qnet_forward_impl.1} parent=47 // pred_fallthru
          _
      $region48: #{_qnet_forward_impl.1} parent=5 // pred_fallthru
        _
      %p874 = scmp.le.s32.totalorder 2, %s13
      // Predicated region
      $region87: #{_qnet_forward_impl.1} parent=5 // pred_check
        %p875 = pneg %p874
      $region88: #{_qnet_forward_impl.1} parent=5 // pred_check_branch
        %877 = sbr.rel (%p875) target = $region90
      $region89: #{_qnet_forward_impl.1} parent=5 // pred_region
        %s878 = ssub.s32 %s13, 2
        // Predicated region
        $region91: #{_qnet_forward_impl.1} parent=89 // pred_check
          %p879 = pneg %p194
        $region92: #{_qnet_forward_impl.1} parent=89 // pred_check_branch
          %881 = sbr.rel (%p879) target = $region94
        $region93: #{_qnet_forward_impl.1} parent=89 // pred_region
          %s882 = sand.u32 %s179, 1
          %s883 = sand.u32 %s179, 1
          %s884 = smul.addr %s883, 32
          %s885 = scalar_lea.vmem [#allocation2], %s884
        $region94: #{_qnet_forward_impl.1} parent=89 // pred_fallthru
          _
      $region90: #{_qnet_forward_impl.1} parent=5 // pred_fallthru
        _
    $region6: #{_qnet_forward_impl.1} parent=1 // loop_footer
      %s17 = sadd.s32 1, %s13
    $region7: #{_qnet_forward_impl.1} parent=1 // loop_footer_branch
      %12 = sbr.rel target = $region3
    $region8: #{_qnet_forward_impl.1} parent=1 // loop_exit
      _

</llo_original>
